<compile_context>
chip_gen: v5e
topology: v5e:2x2
jax: 0.10.0
libtpu: 0.0.40
codegen_flags: <defaults>
</compile_context>

<pallas_src>
import jax
import jax.numpy as jnp
from jax.experimental import pallas as pl
from jax.experimental.pallas import tpu as pltpu

_LANES = 128
_MAX_BLOCK_ROWS = 8192                 # 8192 * 128 * 4 B = 4 MiB f32 block
_VMEM_LIMIT_BYTES = 32 * 1024 * 1024   # covers 2 inputs x 2 buffers x 4 MiB
_SMOOTH = 1.0


def _round_up(x, m):
    return -(-x // m) * m


def _sublane_align(*dtypes):
    # Native tile is (8,128) for 32-bit; sub-32-bit dtypes pack along
    # sublanes, so use 16 rows for 2-byte and 32 rows for 1-byte inputs.
    return max(8, max(32 // jnp.dtype(d).itemsize for d in dtypes))


def _make_dice_partial_kernel(block_rows, needs_mask, rem_last):
    """Kernel producing per-block lane partials [inter, sum_s, sum_t]."""

    def _store(out_ref, s, t):
        # Three direct row stores (no concatenate / sublane shuffle).
        out_ref[0, 0, :] = jnp.sum(s * t, axis=0)
        out_ref[0, 1, :] = jnp.sum(s, axis=0)
        out_ref[0, 2, :] = jnp.sum(t, axis=0)

    def kernel(x_ref, t_ref, out_ref):
        x = x_ref[...].astype(jnp.float32)
        t = t_ref[...].astype(jnp.float32)
        # sigmoid(x) == 0.5 * tanh(0.5 * x) + 0.5 : one EUP push instead of
        # exp + reciprocal.
        s = 0.5 * jnp.tanh(0.5 * x) + 0.5

        if needs_mask:
            last = pl.num_programs(0) - 1

            @pl.when(pl.program_id(0) != last)
            def _clean():
                _store(out_ref, s, t)

            @pl.when(pl.program_id(0) == last)
            def _masked():
                # Only the final block contains pad / out-of-range rows. The
                # compare uses the within-block offset (<= block_rows*128 <
                # 2**20), so int32 arithmetic can never overflow.
                row = jax.lax.broadcasted_iota(jnp.int32, (block_rows, _LANES), 0)
                lane = jax.lax.broadcasted_iota(jnp.int32, (block_rows, _LANES), 1)
                valid = row * _LANES + lane < rem_last
                _store(out_ref,
                       jnp.where(valid, s, 0.0),
                       jnp.where(valid, t, 0.0))
        else:
            _store(out_ref, s, t)

    return kernel


def dice_loss(inputs, targets):
    """JAX/Pallas equivalent of DiceLoss.forward (returns a scalar)."""
    # --- class-index targets branch (replicates the PyTorch one_hot path) ---
    if targets.ndim == 1 and inputs.ndim >= 2 and inputs.shape[1] > 1:
        if inputs.ndim == 2:
            # Never materialize the dense one-hot (saves an entire N x C HBM
            # stream on a bandwidth-bound op):
            #   intersection == sum_r sigmoid(logits)[r, label_r]
            #   targets.sum() == N
            # This path is classification-sized, so plain JAX is fine.
            s = jax.nn.sigmoid(inputs.astype(jnp.float32))
            inter = jnp.sum(jnp.take_along_axis(
                s, targets.astype(jnp.int32)[:, None], axis=1))
            dice = (2.0 * inter + _SMOOTH) / (
                jnp.sum(s) + jnp.float32(targets.shape[0]) + _SMOOTH)
            return 1.0 - dice
        # Exotic-rank fallback: materialize the one-hot, but in bf16 (exact
        # for 0/1) so its HBM stream into the kernel is half the f32 cost.
        targets = jax.nn.one_hot(targets, inputs.shape[1], dtype=jnp.bfloat16)

    x = inputs.reshape(-1)      # native dtype; upcast to f32 inside the kernel
    t = targets.reshape(-1)
    n = x.shape[0]

    align = _sublane_align(x.dtype, t.dtype)
    rows = -(-n // _LANES)                       # ceil(n / 128)
    rows_p = _round_up(rows, align)              # sublane-aligned row count
    if rows_p * _LANES != n:
        # Ragged tail: pad up to an aligned slab. Pad values are irrelevant
        # (masked in-kernel on the last block only); only taken for unaligned
        # sizes, otherwise the reshape below is free.
        pad = rows_p * _LANES - n
        x = jnp.pad(x, (0, pad))
        t = jnp.pad(t, (0, pad))
    x2d = x.reshape(rows_p, _LANES)
    t2d = t.reshape(rows_p, _LANES)

    block_rows = min(_MAX_BLOCK_ROWS, rows_p)
    if block_rows == rows_p and rows_p >= 2 * align:
        # Guarantee >= 2 grid blocks whenever the slab can be split, so
        # v7x's two TensorCores both pull HBM bandwidth.
        block_rows = _round_up(-(-rows_p // 2), align)
    grid = -(-rows_p // block_rows)

    needs_mask = (grid * block_rows * _LANES) != n
    rem_last = n - (grid - 1) * block_rows * _LANES   # valid elems, last block

    kernel = _make_dice_partial_kernel(block_rows, needs_mask, rem_last)

    partials = pl.pallas_call(
        kernel,
        out_shape=jax.ShapeDtypeStruct((grid, 3, _LANES), jnp.float32),
        grid_spec=pltpu.PrefetchScalarGridSpec(
            num_scalar_prefetch=0,
            grid=(grid,),
            in_specs=[
                pl.BlockSpec((block_rows, _LANES), lambda i: (i, 0)),
                pl.BlockSpec((block_rows, _LANES), lambda i: (i, 0)),
            ],
            out_specs=pl.BlockSpec((1, 3, _LANES), lambda i: (i, 0, 0)),
        ),
        compiler_params=pltpu.CompilerParams(
            # Independent per-block partials -> parallel grid axis (megacore).
            # TODO(synk): if xprof on v7x shows only one TC busy, switch this
            # axis to pltpu.CORE_PARALLEL.
            dimension_semantics=("parallel",),
            # Worst case 2 f32 inputs x 2 pipeline buffers x 4 MiB = 16 MiB;
            # raise scoped VMEM so v5e's 16 MiB default doesn't shrink tiles.
            vmem_limit_bytes=_VMEM_LIMIT_BYTES,
        ),
    )(x2d, t2d)

    # Tiny epilogue in plain JAX: reduce (grid, 3, 128) partials, dice formula.
    sums = jnp.sum(partials, axis=(0, 2))
    inter, s_in, s_tg = sums[0], sums[1], sums[2]
    dice = (2.0 * inter + _SMOOTH) / (s_in + s_tg + _SMOOTH)
    return 1.0 - dice


def _dice_loss_ref(inputs, targets):
    """Pure-JAX reference, mirrors the PyTorch module exactly."""
    if targets.ndim == 1 and inputs.ndim >= 2 and inputs.shape[1] > 1:
        targets = jax.nn.one_hot(targets, inputs.shape[1], dtype=jnp.float32)
    s = jax.nn.sigmoid(inputs.astype(jnp.float32))
    t = targets.astype(jnp.float32)
    inter = jnp.sum(s * t)
    dice = (2.0 * inter + _SMOOTH) / (jnp.sum(s) + jnp.sum(t) + _SMOOTH)
    return 1.0 - dice


if __name__ == "__main__":
    key = jax.random.PRNGKey(0)
    k1, k2, k3, k4, k5, k6, k7, k8 = jax.random.split(key, 8)

    # 1) Typical segmentation use: f32 logits + binary masks passed as bf16
    #    (exact for 0/1 -> ~25% less HBM traffic). Aligned: no pad, no mask.
    x = jax.random.normal(k1, (2, 4, 16, 16), dtype=jnp.float32)
    tgt = (jax.random.uniform(k2, (2, 4, 16, 16)) > 0.5).astype(jnp.bfloat16)
    loss = jax.block_until_ready(dice_loss(x, tgt))
    ref = jax.block_until_ready(_dice_loss_ref(x, tgt))
    assert jnp.allclose(loss, ref, atol=1e-5, rtol=1e-5), (loss, ref)

    # 2) Class-index branch: dense one-hot never materialized (gather path).
    logits = jax.random.normal(k3, (8, 4), dtype=jnp.float32)
    labels = jax.random.randint(k4, (8,), 0, 4)
    loss2 = jax.block_until_ready(dice_loss(logits, labels))
    ref2 = jax.block_until_ready(_dice_loss_ref(logits, labels))
    assert jnp.allclose(loss2, ref2, atol=1e-5, rtol=1e-5), (loss2, ref2)

    # 3) Multi-block grid (>= 2 blocks, ragged last block -> mask only on the
    #    final grid step), bf16 masks, parallel grid axis exercised.
    xb = jax.random.normal(k5, (1, 1, 2600, 128), dtype=jnp.float32)
    tb = (jax.random.uniform(k6, (1, 1, 2600, 128)) > 0.5).astype(jnp.bfloat16)
    loss3 = jax.block_until_ready(dice_loss(xb, tb))
    ref3 = jax.block_until_ready(_dice_loss_ref(xb, tb))
    assert jnp.allclose(loss3, ref3, atol=1e-4, rtol=1e-4), (loss3, ref3)

    # 4) Unaligned element count + soft (non-binary) f32 targets: host pad +
    #    in-kernel tail mask, single-block grid.
    xc = jax.random.normal(k7, (2, 3, 7, 5), dtype=jnp.float32)
    tc = jax.random.uniform(k8, (2, 3, 7, 5), dtype=jnp.float32)
    loss4 = jax.block_until_ready(dice_loss(xc, tc))
    ref4 = jax.block_until_ready(_dice_loss_ref(xc, tc))
    assert jnp.allclose(loss4, ref4, atol=1e-5, rtol=1e-5), (loss4, ref4)

    print("KERNEL_OK")
</pallas_src>

<mosaic_0001>
module attributes {stable_mosaic.version = 11 : i64} {
  func.func @kernel(%arg0: i32, %arg1: memref<16x128xf32, #tpu.memory_space<vmem>>, %arg2: memref<16x128xbf16, #tpu.memory_space<vmem>>, %arg3: memref<1x3x128xf32, #tpu.memory_space<vmem>>) attributes {dimension_semantics = [#tpu.dimension_semantics<parallel>], iteration_bounds = array<i64: 1>, scalar_prefetch = 0 : i64, scratch_operands = 0 : i64, tpu.core_type = #tpu.core_type<tc>, window_params = [{transform_indices = @transform_0, window_bounds = array<i64: 16, 128>}, {transform_indices = @transform_1, window_bounds = array<i64: 16, 128>}, {transform_indices = @transform_2, window_bounds = array<i64: 1, 3, 128>}]} {
    %c0 = arith.constant 0 : index
    %c0_0 = arith.constant 0 : index
    %0 = vector.load %arg1[%c0, %c0_0] : memref<16x128xf32, #tpu.memory_space<vmem>>, vector<16x128xf32>
    %c0_1 = arith.constant 0 : index
    %c0_2 = arith.constant 0 : index
    %1 = vector.load %arg2[%c0_1, %c0_2] : memref<16x128xbf16, #tpu.memory_space<vmem>>, vector<16x128xbf16>
    %2 = arith.extf %1 : vector<16x128xbf16> to vector<16x128xf32>
    %cst = arith.constant 5.000000e-01 : f32
    %3 = vector.broadcast %cst : f32 to vector<16x128xf32>
    %4 = arith.mulf %3, %0 : vector<16x128xf32>
    %5 = math.tanh %4 : vector<16x128xf32>
    %cst_3 = arith.constant 5.000000e-01 : f32
    %6 = vector.broadcast %cst_3 : f32 to vector<16x128xf32>
    %7 = arith.mulf %6, %5 : vector<16x128xf32>
    %cst_4 = arith.constant 5.000000e-01 : f32
    %8 = vector.broadcast %cst_4 : f32 to vector<16x128xf32>
    %9 = arith.addf %7, %8 : vector<16x128xf32>
    %10 = arith.mulf %9, %2 : vector<16x128xf32>
    %cst_5 = arith.constant dense<0.000000e+00> : vector<128xf32>
    %11 = vector.multi_reduction <add>, %10, %cst_5 [0] : vector<16x128xf32> to vector<128xf32>
    %c0_6 = arith.constant 0 : index
    %c0_7 = arith.constant 0 : index
    %c0_8 = arith.constant 0 : index
    %12 = vector.load %arg3[%c0_6, %c0_7, %c0_8] : memref<1x3x128xf32, #tpu.memory_space<vmem>>, vector<1x1x128xf32>
    %13 = vector.shape_cast %12 : vector<1x1x128xf32> to vector<128xf32>
    %14 = vector.shape_cast %11 : vector<128xf32> to vector<1x1x128xf32>
    tpu.vector_store %arg3[%c0_6, %c0_7, %c0_8], %14 {strides = array<i32>} : memref<1x3x128xf32, #tpu.memory_space<vmem>>, vector<1x1x128xf32>,
    %cst_9 = arith.constant dense<0.000000e+00> : vector<128xf32>
    %15 = vector.multi_reduction <add>, %9, %cst_9 [0] : vector<16x128xf32> to vector<128xf32>
    %c0_10 = arith.constant 0 : index
    %c1 = arith.constant 1 : index
    %c0_11 = arith.constant 0 : index
    %16 = vector.load %arg3[%c0_10, %c1, %c0_11] : memref<1x3x128xf32, #tpu.memory_space<vmem>>, vector<1x1x128xf32>
    %17 = vector.shape_cast %16 : vector<1x1x128xf32> to vector<128xf32>
    %18 = vector.shape_cast %15 : vector<128xf32> to vector<1x1x128xf32>
    tpu.vector_store %arg3[%c0_10, %c1, %c0_11], %18 {strides = array<i32>} : memref<1x3x128xf32, #tpu.memory_space<vmem>>, vector<1x1x128xf32>,
    %cst_12 = arith.constant dense<0.000000e+00> : vector<128xf32>
    %19 = vector.multi_reduction <add>, %2, %cst_12 [0] : vector<16x128xf32> to vector<128xf32>
    %c0_13 = arith.constant 0 : index
    %c2 = arith.constant 2 : index
    %c0_14 = arith.constant 0 : index
    %20 = vector.load %arg3[%c0_13, %c2, %c0_14] : memref<1x3x128xf32, #tpu.memory_space<vmem>>, vector<1x1x128xf32>
    %21 = vector.shape_cast %20 : vector<1x1x128xf32> to vector<128xf32>
    %22 = vector.shape_cast %19 : vector<128xf32> to vector<1x1x128xf32>
    tpu.vector_store %arg3[%c0_13, %c2, %c0_14], %22 {strides = array<i32>} : memref<1x3x128xf32, #tpu.memory_space<vmem>>, vector<1x1x128xf32>,
    return
  }
  func.func @transform_0(%arg0: i32) -> (i32, i32) {
    %c0_i32 = arith.constant 0 : i32
    %c0_i32_0 = arith.constant 0 : i32
    return %arg0, %c0_i32 : i32, i32
  }
  func.func @transform_1(%arg0: i32) -> (i32, i32) {
    %c0_i32 = arith.constant 0 : i32
    %c0_i32_0 = arith.constant 0 : i32
    return %arg0, %c0_i32 : i32, i32
  }
  func.func @transform_2(%arg0: i32) -> (i32, i32, i32) {
    %c0_i32 = arith.constant 0 : i32
    %c0_i32_0 = arith.constant 0 : i32
    %c0_i32_1 = arith.constant 0 : i32
    return %arg0, %c0_i32, %c0_i32_0 : i32, i32, i32
  }
}

</mosaic_0001>

<llo_original>
// kernel: tpu_custom_call.1
$region0: #{tpu_custom_call.1}
  #allocation0 [shape = 'u32[]', space=smem, size = 0x4, offset = 0x4, fixed_abs, tag = 'smem constant byte address 0x4 - core index']
  #allocation1 [shape = 'u32[72,128]{1,0:T(1,128)}', space=vmem, size = 0x9000, scoped, tag = 'internal scratch']
  %s0 = inlined_call_operand.hbm [shape: f32[16,128], index: 0, kind: input, shape index: {}]
  %s1 = inlined_call_operand.hbm [shape: bf16[16,128], index: 1, kind: input, shape index: {}]
  %s2 = inlined_call_operand.vmem [shape: f32[1,3,128], index: 2, kind: output, shape index: {}]
  %s3 = sld [smem:[#allocation0]]
  $region26: #{tpu_custom_call.1} parent=0
    _
  %s5 = ssub.s32 1, %s3
  %s6 = scalar_select 0, %s5, %s3
  $region1: #{tpu_custom_call.1} parent=0
    #allocation2 [shape = 'u8[8192]{0}', space=vmem, size = 0x2000, scoped, tag = 'input window, operand 0, single buffered']
    #allocation3 [shape = 's32[1]{0}', space=sflag, size = 0x4, scoped, tag = 'scoped memory for tpu_custom_call.1']
    #allocation4 [shape = 'u8[4096]{0}', space=vmem, size = 0x1000, scoped, tag = 'input window, operand 1, single buffered']
    #allocation5 [shape = 's32[1]{0}', space=sflag, size = 0x4, scoped, tag = 'scoped memory for tpu_custom_call.1']
    %7 = vsyncpa [#allocation3], 0
    %8 = vsyncpa [#allocation5], 0
    // Predicated region
    $region2: #{tpu_custom_call.1} parent=1 // pred_check
      _
    $region3: #{tpu_custom_call.1} parent=1 // pred_check_branch
      %10 = sbr.rel (0) target = $region5
    $region4: #{tpu_custom_call.1} parent=1 // pred_region
      %12 = vsyncadd [#allocation3], 0
      %s13 = sshll.u32 %s0, 4
      %s14 = int_to_ptr.hbm [resolvable:$true] %s13
      %s15 = sshll.u32 [#allocation2], 4
      %s16 = int_to_ptr.vmem [resolvable:$true] %s15
      %21 = dma.hbm_to_vmem [thread:$0]  %s14, 256, %s16, [#allocation3], 128, 128, 8
    $region5: #{tpu_custom_call.1} parent=1 // pred_fallthru
      _
    // Predicated region
    $region6: #{tpu_custom_call.1} parent=1 // pred_check
      _
    $region7: #{tpu_custom_call.1} parent=1 // pred_check_branch
      %23 = sbr.rel (0) target = $region9
    $region8: #{tpu_custom_call.1} parent=1 // pred_region
      %25 = vsyncadd [#allocation5], 0
      %s26 = sshll.u32 %s1, 4
      %s27 = int_to_ptr.hbm [resolvable:$true] %s26
      %s28 = sshll.u32 [#allocation4], 4
      %s29 = int_to_ptr.vmem [resolvable:$true] %s28
      %34 = dma.hbm_to_vmem [thread:$0]  %s27, 128, %s29, [#allocation5], 64, 64, 4
    $region9: #{tpu_custom_call.1} parent=1 // pred_fallthru
      _
    // Predicated region
    $region10: #{tpu_custom_call.1} parent=1 // pred_check
      _
    $region11: #{tpu_custom_call.1} parent=1 // pred_check_branch
      %36 = sbr.rel (0) target = $region13
    $region12: #{tpu_custom_call.1} parent=1 // pred_region
      %38 = dma.done [#allocation3], 256
    $region13: #{tpu_custom_call.1} parent=1 // pred_fallthru
      _
    // Predicated region
    $region14: #{tpu_custom_call.1} parent=1 // pred_check
      _
    $region15: #{tpu_custom_call.1} parent=1 // pred_check_branch
      %40 = sbr.rel (0) target = $region17
    $region16: #{tpu_custom_call.1} parent=1 // pred_region
      %42 = dma.done [#allocation5], 128
    $region17: #{tpu_custom_call.1} parent=1 // pred_fallthru
      _
    %v43 = vld [vmem:[#allocation2] sm:$0xff]
    %v44 = vld [vmem:[#allocation2 + $0x8] sm:$0xff]
    %v45 = vld [vmem:[#allocation4] sm:$0xf]
    %v46 = vld [vmem:[#allocation4 + $0x4] sm:$0xf]
    %v47 = vunpack.c.l.bf16 %v45
    %v48 = vunpack.c.l.bf16 %v46
    %v49 = vmul.f32 %v43, 0.5
    %v50 = vmul.f32 %v44, 0.5
    %v51 = vtanh.pop %v49
    %v52 = vtanh.pop %v50
    %v53 = vmul.f32 %v51, 0.5
    %v54 = vmul.f32 %v52, 0.5
    %v55 = vadd.f32 %v53, 0.5
    %v56 = vadd.f32 %v54, 0.5
    %v57 = vmul.f32 %v55, %v47
    %v58 = vmul.f32 %v56, %v48
    %v59 = vadd.f32 %v57, %v58
    %v60 = vrot.slane %v59, 4
    %v61 = vadd.f32 %v59, %v60
    %v62 = vrot.slane %v61, 2
    %v63 = vadd.f32 %v61, %v62
    %v64 = vrot.slane %v63, 1
    %v65 = vadd.f32 %v63, %v64
    %66 = vst [vmem:[%s2] sm:$0x1] %v65
    %v67 = vadd.f32 %v55, %v56
    %v68 = vrot.slane %v67, 4
    %v69 = vadd.f32 %v67, %v68
    %v70 = vrot.slane %v69, 2
    %v71 = vadd.f32 %v69, %v70
    %v72 = vrot.slane %v71, 1
    %v73 = vadd.f32 %v71, %v72
    %74 = vst [vmem:[%s2 + $0x1] sm:$0x1] %v73
    %v75 = vadd.f32 %v47, %v48
    %v76 = vrot.slane %v75, 4
    %v77 = vadd.f32 %v75, %v76
    %v78 = vrot.slane %v77, 2
    %v79 = vadd.f32 %v77, %v78
    %v80 = vrot.slane %v79, 1
    %v81 = vadd.f32 %v79, %v80
    %82 = vst [vmem:[%s2 + $0x2] sm:$0x1] %v81
    // Predicated region
    $region18: #{tpu_custom_call.1} parent=1 // pred_check
      _
    $region19: #{tpu_custom_call.1} parent=1 // pred_check_branch
      %84 = sbr.rel (0) target = $region21
    $region20: #{tpu_custom_call.1} parent=1 // pred_region
      _
    $region21: #{tpu_custom_call.1} parent=1 // pred_fallthru
      _
    // Predicated region
    $region22: #{tpu_custom_call.1} parent=1 // pred_check
      _
    $region23: #{tpu_custom_call.1} parent=1 // pred_check_branch
      %86 = sbr.rel (0) target = $region25
    $region24: #{tpu_custom_call.1} parent=1 // pred_region
      _
    $region25: #{tpu_custom_call.1} parent=1 // pred_fallthru
      _
    %87 = vsyncpa [#allocation3], 1
    %88 = vsyncpa [#allocation5], 1

</llo_original>
